<compile_context>
chip_gen: v7x
topology: tpu7x:2x2x1
jax: 0.10.0
libtpu: 0.0.40
codegen_flags: <defaults>
</compile_context>

<pallas_src>
import functools
import math

import jax
import jax.numpy as jnp
from jax.experimental import pallas as pl
from jax.experimental.pallas import tpu as pltpu

EPS = 1e-5
COMPUTE_DTYPE = jnp.bfloat16   # MXU operand dtype (accumulation stays f32)


# ----------------------------- Pallas kernels -----------------------------

def convt_kernel(x_ref, w_ref, b_ref, o_ref):
    """ConvTranspose2d(k=2, s=2) for one output-row parity `di` (the grid axis).

    x_ref: (N*H*W, Cin) bf16
    w_ref: (1, Cin, 2*Ct) bf16, columns ordered (dj, out_channel)
    b_ref: (1, 2*Ct) f32
    o_ref: (N, H, 1, W, 2*Ct) f32 block of an (N, H, 2, W, 2*Ct) output.
    Writing in the (n, i, di, j, (dj, c)) layout makes the sub-pixel interleave a *free*
    row-major reshape in the wrapper (no XLA transpose / extra HBM round trip).
    """
    y = jnp.dot(x_ref[...], w_ref[0], preferred_element_type=jnp.float32)
    y = y + b_ref[...]
    o_ref[...] = y.reshape(o_ref.shape)


def conv3x3_bn_stats_kernel(scale_ref, shift_ref, x_ref, w_ref, b_ref,
                            o_ref, sum_ref, sq_ref, xp_ref,
                            *, apply_input_act, row_group):
    """3x3 conv (padding=1) over one batch image with:
       * optional fused input BatchNorm(scale, shift) + ReLU (previous block's BN),
       * in-kernel halo via a zero-filled VMEM scratch (no XLA pad),
       * fused BatchNorm statistics epilogue (per-channel sum / sum-of-squares accumulated
         across the batch grid into revisited (1, Cout) outputs).
    """
    n = pl.program_id(0)

    @pl.when(n == 0)
    def _():
        sum_ref[...] = jnp.zeros_like(sum_ref)
        sq_ref[...] = jnp.zeros_like(sq_ref)

    hp2, wp2, cin = xp_ref.shape
    hh, ww = hp2 - 2, wp2 - 2
    cout = o_ref.shape[3]
    ngroups = hh // row_group

    # Build the zero-padded (halo) input in VMEM scratch, applying the previous block's
    # BN + ReLU on the fly.  Row groups keep vreg pressure bounded.
    xp_ref[...] = jnp.zeros(xp_ref.shape, xp_ref.dtype)
    if apply_input_act:
        act_scale = scale_ref[...].reshape(1, 1, cin)
        act_shift = shift_ref[...].reshape(1, 1, cin)
    for g in range(ngroups):
        r0 = g * row_group
        x = x_ref[0, r0:r0 + row_group, :, :]
        if apply_input_act:
            x = jnp.maximum(x * act_scale + act_shift, 0.0)
        xp_ref[1 + r0:1 + r0 + row_group, 1:1 + ww, :] = x.astype(xp_ref.dtype)

    w = w_ref[...]          # (3, 3, Cin, Cout) bf16
    b = b_ref[...]          # (1, Cout) f32

    csum = jnp.zeros((1, cout), jnp.float32)
    csq = jnp.zeros((1, cout), jnp.float32)

    for g in range(ngroups):
        r0 = g * row_group
        acc = jnp.zeros((row_group * ww, cout), jnp.float32)
        for dh in range(3):
            rows = xp_ref[r0 + dh:r0 + dh + row_group, :, :]     # (RG, ww+2, Cin) bf16
            for dw in range(3):
                win = rows[:, dw:dw + ww, :].reshape(row_group * ww, cin)
                acc = acc + jnp.dot(win, w[dh, dw],
                                    preferred_element_type=jnp.float32)
        acc = acc + b
        csum = csum + jnp.sum(acc, axis=0, keepdims=True)
        csq = csq + jnp.sum(acc * acc, axis=0, keepdims=True)
        o_ref[0, r0:r0 + row_group, :, :] = acc.reshape(row_group, ww, cout)

    sum_ref[...] += csum
    sq_ref[...] += csq


def bn_relu_kernel(x_ref, scale_ref, shift_ref, o_ref):
    o_ref[...] = jnp.maximum(x_ref[...] * scale_ref[...] + shift_ref[...], 0.0)


# ----------------------------- Wrappers -----------------------------------

def convt_2x2_s2(x_nhwc, wt, bt):
    """ConvTranspose2d(k=2, s=2). wt: PyTorch layout (Cin, Ct, 2, 2)."""
    n, h, w, cin = x_nhwc.shape
    ct = wt.shape[1]
    # w2[di, ci, dj*ct + co] = wt[ci, co, di, dj]
    w2 = jnp.transpose(wt, (2, 0, 3, 1)).reshape(2, cin, 2 * ct).astype(COMPUTE_DTYPE)
    b2 = jnp.tile(bt, 2).reshape(1, 2 * ct).astype(jnp.float32)
    xm = x_nhwc.reshape(n * h * w, cin).astype(COMPUTE_DTYPE)
    out = pl.pallas_call(
        convt_kernel,
        out_shape=jax.ShapeDtypeStruct((n, h, 2, w, 2 * ct), jnp.float32),
        grid=(2,),
        in_specs=[
            pl.BlockSpec((n * h * w, cin), lambda di: (0, 0)),
            pl.BlockSpec((1, cin, 2 * ct), lambda di: (di, 0, 0)),
            pl.BlockSpec((1, 2 * ct), lambda di: (0, 0)),
        ],
        out_specs=pl.BlockSpec((n, h, 1, w, 2 * ct), lambda di: (0, 0, di, 0, 0)),
        compiler_params=pltpu.CompilerParams(dimension_semantics=("parallel",)),
    )(xm, w2, b2)
    # (n, i, di, j, (dj, c)) row-major == (n, 2h, 2w, ct): free reshape, no transpose.
    return out.reshape(n, 2 * h, 2 * w, ct)


def conv3x3_bn_stats(x_nhwc, w_hwio, b, scale, shift, *, apply_input_act):
    """Conv2d(3x3, pad=1) with optional fused input BN+ReLU and fused BN statistics."""
    n, hh, ww, cin = x_nhwc.shape
    cout = w_hwio.shape[3]
    rg = math.gcd(hh, 8)
    kern = functools.partial(conv3x3_bn_stats_kernel,
                             apply_input_act=apply_input_act, row_group=rg)
    y, s, q = pl.pallas_call(
        kern,
        out_shape=(jax.ShapeDtypeStruct((n, hh, ww, cout), jnp.float32),
                   jax.ShapeDtypeStruct((1, cout), jnp.float32),
                   jax.ShapeDtypeStruct((1, cout), jnp.float32)),
        grid=(n,),
        in_specs=[
            pl.BlockSpec((1, cin), lambda i: (0, 0)),
            pl.BlockSpec((1, cin), lambda i: (0, 0)),
            pl.BlockSpec((1, hh, ww, cin), lambda i: (i, 0, 0, 0)),
            pl.BlockSpec((3, 3, cin, cout), lambda i: (0, 0, 0, 0)),
            pl.BlockSpec((1, cout), lambda i: (0, 0)),
        ],
        out_specs=(pl.BlockSpec((1, hh, ww, cout), lambda i: (i, 0, 0, 0)),
                   pl.BlockSpec((1, cout), lambda i: (0, 0)),
                   pl.BlockSpec((1, cout), lambda i: (0, 0))),
        scratch_shapes=[pltpu.VMEM((hh + 2, ww + 2, cin), COMPUTE_DTYPE)],
        compiler_params=pltpu.CompilerParams(
            # sum/sq accumulate across the batch axis -> must stay sequential.
            dimension_semantics=("arbitrary",),
            vmem_limit_bytes=32 * 1024 * 1024),
    )(scale.reshape(1, cin).astype(jnp.float32),
      shift.reshape(1, cin).astype(jnp.float32),
      x_nhwc,
      w_hwio.astype(COMPUTE_DTYPE),
      b.reshape(1, cout).astype(jnp.float32))
    return y, s[0], q[0]


def _row_tile(rows, cap=1024):
    for cand in (cap, 512, 256, 128, 64, 32, 16, 8):
        if cand <= rows and rows % cand == 0:
            return cand
    return rows


def bn_relu_lane_dense(h, scale, shift):
    """BatchNorm scale/shift + ReLU with a lane-dense (multiple-of-128) last dimension."""
    n, hh, ww, c = h.shape
    m = n * hh * ww
    fold = 1
    if 128 % c == 0:
        fold = 128 // c
        while fold > 1 and m % fold != 0:
            fold //= 2
    rows, lanes = m // fold, fold * c
    x2 = h.reshape(rows, lanes)                       # free row-major regrouping
    sc = jnp.tile(scale, fold).reshape(1, lanes).astype(jnp.float32)
    sh = jnp.tile(shift, fold).reshape(1, lanes).astype(jnp.float32)
    tm = _row_tile(rows)
    out = pl.pallas_call(
        bn_relu_kernel,
        out_shape=jax.ShapeDtypeStruct((rows, lanes), jnp.float32),
        grid=(rows // tm,),
        in_specs=[pl.BlockSpec((tm, lanes), lambda i: (i, 0)),
                  pl.BlockSpec((1, lanes), lambda i: (0, 0)),
                  pl.BlockSpec((1, lanes), lambda i: (0, 0))],
        out_specs=pl.BlockSpec((tm, lanes), lambda i: (i, 0)),
        compiler_params=pltpu.CompilerParams(dimension_semantics=("parallel",)),
    )(x2, sc, sh)
    return out.reshape(n, hh, ww, c)


def up_forward(x_nchw, p):
    """Pallas implementation of Up.forward. Input/output in PyTorch NCHW layout."""
    x = jnp.transpose(x_nchw, (0, 2, 3, 1)).astype(jnp.float32)     # -> NHWC

    # upsample: ConvTranspose2d(Cin, Cin, k=2, s=2); interleave fused into the out BlockSpec.
    h0 = convt_2x2_s2(x, p["wt"], p["bt"])
    n, hh, ww, cin = h0.shape
    count = n * hh * ww

    # DoubleConv block 1: conv3x3 + fused BN statistics.
    one = jnp.ones((cin,), jnp.float32)
    zero = jnp.zeros((cin,), jnp.float32)
    h1, s1, q1 = conv3x3_bn_stats(h0, p["w1"], p["b1"], one, zero,
                                  apply_input_act=False)
    mean1 = s1 / count
    var1 = q1 / count - mean1 * mean1          # biased variance (training-mode BN)
    scale1 = p["g1"] * jax.lax.rsqrt(var1 + EPS)
    shift1 = p["be1"] - mean1 * scale1

    # DoubleConv block 2: BN1 + ReLU fused into conv2's input path, + fused BN statistics.
    h2, s2, q2 = conv3x3_bn_stats(h1, p["w2"], p["b2"], scale1, shift1,
                                  apply_input_act=True)
    mean2 = s2 / count
    var2 = q2 / count - mean2 * mean2
    scale2 = p["g2"] * jax.lax.rsqrt(var2 + EPS)
    shift2 = p["be2"] - mean2 * scale2

    # Final BN + ReLU, lane-dense elementwise kernel.
    out = bn_relu_lane_dense(h2, scale2, shift2)
    return jnp.transpose(out, (0, 3, 1, 2))                          # -> NCHW


# ----------------------------- Pure-JAX reference --------------------------

def ref_forward(x, p):
    """NCHW f32 reference mirroring the PyTorch module (training-mode BatchNorm)."""
    N, cin, H, W = x.shape
    ct = p["wt"].shape[1]
    y = jnp.einsum("nchw,cdkl->ndhkwl", x, p["wt"]).reshape(N, ct, 2 * H, 2 * W)
    y = y + p["bt"][None, :, None, None]

    def conv_bn_relu(h, w, b, g, be):
        Hh, Ww = h.shape[2], h.shape[3]
        hp = jnp.pad(h, ((0, 0), (0, 0), (1, 1), (1, 1)))
        o = b[None, :, None, None] * jnp.ones((h.shape[0], w.shape[0], Hh, Ww))
        for kh in range(3):
            for kw in range(3):
                o = o + jnp.einsum("nchw,oc->nohw",
                                   hp[:, :, kh:kh + Hh, kw:kw + Ww],
                                   w[:, :, kh, kw])
        mean = o.mean(axis=(0, 2, 3))
        var = o.var(axis=(0, 2, 3))
        o = (o - mean[None, :, None, None]) * jax.lax.rsqrt(var + EPS)[None, :, None, None]
        o = o * g[None, :, None, None] + be[None, :, None, None]
        return jnp.maximum(o, 0.0)

    h = conv_bn_relu(y, p["w1"], p["b1"], p["g1"], p["be1"])
    h = conv_bn_relu(h, p["w2"], p["b2"], p["g2"], p["be2"])
    return h


# ----------------------------- Main ----------------------------------------

if __name__ == "__main__":
    N, Cin, Cout, H, W = 2, 4, 8, 16, 16

    key = jax.random.PRNGKey(0)
    ks = jax.random.split(key, 10)

    # Deterministic synthetic parameters (PyTorch shapes).
    params_pt = {
        "wt": 0.1 * jax.random.normal(ks[0], (Cin, Cin, 2, 2), jnp.float32),   # ConvTranspose2d
        "bt": 0.1 * jax.random.normal(ks[1], (Cin,), jnp.float32),
        "w1_pt": 0.1 * jax.random.normal(ks[2], (Cout, Cin, 3, 3), jnp.float32),
        "b1": 0.1 * jax.random.normal(ks[3], (Cout,), jnp.float32),
        "g1": 1.0 + 0.1 * jax.random.normal(ks[4], (Cout,), jnp.float32),
        "be1": 0.1 * jax.random.normal(ks[5], (Cout,), jnp.float32),
        "w2_pt": 0.1 * jax.random.normal(ks[6], (Cout, Cout, 3, 3), jnp.float32),
        "b2": 0.1 * jax.random.normal(ks[7], (Cout,), jnp.float32),
        "g2": 1.0 + 0.1 * jax.random.normal(ks[8], (Cout,), jnp.float32),
        "be2": 0.1 * jax.random.normal(ks[9], (Cout,), jnp.float32),
    }

    # Kernel-side parameter views: conv weights OIHW -> HWIO.
    params = dict(params_pt)
    params["w1"] = jnp.transpose(params_pt["w1_pt"], (2, 3, 1, 0))
    params["w2"] = jnp.transpose(params_pt["w2_pt"], (2, 3, 1, 0))
    # Reference uses PyTorch OIHW weights directly.
    params_ref = dict(params_pt)
    params_ref["w1"] = params_pt["w1_pt"]
    params_ref["w2"] = params_pt["w2_pt"]

    x = jax.random.normal(jax.random.PRNGKey(42), (N, Cin, H, W), jnp.float32)

    out = up_forward(x, params)
    out = jax.block_until_ready(out)

    assert out.shape == (N, Cout, 2 * H, 2 * W), out.shape

    ref = ref_forward(x, params_ref)
    # bf16 MXU operands (per perf review) -> tolerance reflects bf16 rounding through
    # three stacked matmul layers; with f32 operands this matches at ~2e-3.
    assert jnp.allclose(out, ref, atol=5e-2, rtol=5e-2), float(jnp.max(jnp.abs(out - ref)))

    print("KERNEL_OK")
</pallas_src>

<mosaic_0001>
module attributes {stable_mosaic.version = 11 : i64} {
  func.func @convt_kernel(%arg0: i32, %arg1: memref<512x4xbf16, #tpu.memory_space<vmem>>, %arg2: memref<1x4x8xbf16, #tpu.memory_space<vmem>>, %arg3: memref<1x8xf32, #tpu.memory_space<vmem>>, %arg4: memref<2x16x1x16x8xf32, #tpu.memory_space<vmem>>) attributes {dimension_semantics = [#tpu.dimension_semantics<parallel>], iteration_bounds = array<i64: 2>, scalar_prefetch = 0 : i64, scratch_operands = 0 : i64, tpu.core_type = #tpu.core_type<tc>, window_params = [{pipeline_mode = #tpu.pipeline_mode<synchronous>, transform_indices = @transform_0, window_bounds = array<i64: 512, 4>}, {transform_indices = @transform_1, window_bounds = array<i64: 1, 4, 8>}, {pipeline_mode = #tpu.pipeline_mode<synchronous>, transform_indices = @transform_2, window_bounds = array<i64: 1, 8>}, {transform_indices = @transform_3, window_bounds = array<i64: 2, 16, 1, 16, 8>}]} {
    %c0 = arith.constant 0 : index
    %c0_0 = arith.constant 0 : index
    %0 = vector.load %arg1[%c0, %c0_0] : memref<512x4xbf16, #tpu.memory_space<vmem>>, vector<512x4xbf16>
    %c0_1 = arith.constant 0 : index
    %c0_2 = arith.constant 0 : index
    %c0_3 = arith.constant 0 : index
    %1 = vector.load %arg2[%c0_1, %c0_2, %c0_3] : memref<1x4x8xbf16, #tpu.memory_space<vmem>>, vector<1x4x8xbf16>
    %2 = vector.shape_cast %1 : vector<1x4x8xbf16> to vector<4x8xbf16>
    %cst = arith.constant dense<0.000000e+00> : vector<512x8xf32>
    %3 = tpu.matmul %0, %2, %cst {dimension_numbers = #tpu.dot_dimension_numbers<[1], [0], [0], [1], [0, 0, 1, 1], [], []>} : vector<512x4xbf16>, vector<4x8xbf16>, vector<512x8xf32> -> vector<512x8xf32>
    %c0_4 = arith.constant 0 : index
    %c0_5 = arith.constant 0 : index
    %4 = vector.load %arg3[%c0_4, %c0_5] : memref<1x8xf32, #tpu.memory_space<vmem>>, vector<1x8xf32>
    %5 = vector.broadcast %4 : vector<1x8xf32> to vector<512x8xf32>
    %6 = arith.addf %3, %5 : vector<512x8xf32>
    %7 = vector.shape_cast %6 : vector<512x8xf32> to vector<2x16x1x16x8xf32>
    %c0_6 = arith.constant 0 : index
    %c0_7 = arith.constant 0 : index
    %c0_8 = arith.constant 0 : index
    %c0_9 = arith.constant 0 : index
    %c0_10 = arith.constant 0 : index
    %8 = vector.load %arg4[%c0_6, %c0_7, %c0_8, %c0_9, %c0_10] : memref<2x16x1x16x8xf32, #tpu.memory_space<vmem>>, vector<2x16x1x16x8xf32>
    tpu.vector_store %arg4[%c0_6, %c0_7, %c0_8, %c0_9, %c0_10], %7 {strides = array<i32>} : memref<2x16x1x16x8xf32, #tpu.memory_space<vmem>>, vector<2x16x1x16x8xf32>,
    return
  }
  func.func @transform_0(%arg0: i32) -> (i32, i32) {
    %c0_i32 = arith.constant 0 : i32
    %c0_i32_0 = arith.constant 0 : i32
    %c0_i32_1 = arith.constant 0 : i32
    return %c0_i32, %c0_i32_0 : i32, i32
  }
  func.func @transform_1(%arg0: i32) -> (i32, i32, i32) {
    %c0_i32 = arith.constant 0 : i32
    %c0_i32_0 = arith.constant 0 : i32
    %c0_i32_1 = arith.constant 0 : i32
    return %arg0, %c0_i32, %c0_i32_0 : i32, i32, i32
  }
  func.func @transform_2(%arg0: i32) -> (i32, i32) {
    %c0_i32 = arith.constant 0 : i32
    %c0_i32_0 = arith.constant 0 : i32
    %c0_i32_1 = arith.constant 0 : i32
    return %c0_i32, %c0_i32_0 : i32, i32
  }
  func.func @transform_3(%arg0: i32) -> (i32, i32, i32, i32, i32) {
    %c0_i32 = arith.constant 0 : i32
    %c0_i32_0 = arith.constant 0 : i32
    %c0_i32_1 = arith.constant 0 : i32
    %c0_i32_2 = arith.constant 0 : i32
    %c0_i32_3 = arith.constant 0 : i32
    return %c0_i32, %c0_i32_0, %arg0, %c0_i32_1, %c0_i32_2 : i32, i32, i32, i32, i32
  }
}

</mosaic_0001>

<llo_original>
// kernel: tpu_custom_call.1
$region0: #{tpu_custom_call.1}
  #allocation0 [shape = 'u32[]', space=smem, size = 0x4, offset = 0x4, fixed_abs, tag = 'smem constant byte address 0x4 - core index']
  #allocation1 [shape = 'u32[144,128]{1,0:T(1,128)}', space=vmem, size = 0x12000, scoped, tag = 'internal scratch']
  %s0 = inlined_call_operand.vmem [shape: bf16[512,4], index: 0, kind: input, shape index: {}]
  %s1 = inlined_call_operand.vmem [shape: bf16[2,4,8], index: 1, kind: input, shape index: {}]
  %s2 = inlined_call_operand.vmem [shape: f32[1,8], index: 2, kind: input, shape index: {}]
  %s3 = inlined_call_operand.vmem [shape: f32[2,16,2,16,8], index: 3, kind: output, shape index: {}]
  %s4 = sld [smem:[#allocation0]]
  $region79: #{tpu_custom_call.1} parent=0
    _
  %s6 = ssub.s32 1, %s4
  %s7 = scalar_select 0, %s6, %s4
  $region1: #{tpu_custom_call.1} parent=0
    #allocation2 [shape = 'u8[524288]{0}', space=vmem, size = 0x80000, scoped, tag = 'output window, operand 0']
    loop: start=0, step=1, limit=4
    $region2: #{tpu_custom_call.1} parent=1 // loop_pre_header
      _
    $region3: #{tpu_custom_call.1} parent=1 // loop_header
      %s9 = sphi 0, %s13
      %p10 = scmp.ge.s32.totalorder %s9, 4
      %s17 = sphi 0, %s17
      %s19 = sphi 0, %s17
      %s20 = sphi 0, %s19
      %s34 = sphi 0, %s20
      %s40 = sphi 0, %s42
      %s43 = sphi 0, %s40
      %s44 = sphi 0, %s43
      %s60 = sphi 0, %s44
      %s64 = sphi 0, %s64
      %s66 = sphi 0, %s64
      %s67 = sphi 0, %s66
      %s81 = sphi 0, %s67
      %s87 = sphi 0, %s89
      %s90 = sphi 0, %s87
      %s91 = sphi 0, %s90
      %s107 = sphi 0, %s91
    $region4: #{tpu_custom_call.1} parent=1 // loop_header_branch
      %12 = sbr.rel (%p10) target = $region8
    $region5: #{tpu_custom_call.1} parent=1 // loop_body
      %s14 = ssub.s32 %s9, 1
      %s15 = ssub.s32 %s9, 2
      %s16 = sadd.s32 %s9, 1
      %s18 = sadd.s32 %s17, 1
      %p21 = scmp.eq.s32.totalorder %s9, 1
      %p22 = scmp.ne.s32.totalorder %s17, %s19
      %p23 = scmp.eq.s32.totalorder %s9, 0
      %p24 = por %p22, %p23
      %p25 = scmp.ne.s32.totalorder %s17, %s19
      %p26 = scmp.eq.s32.totalorder %s14, 1
      %p27 = por %p25, %p26
      %p28 = scmp.ne.s32.totalorder %s19, %s20
      %p29 = scmp.eq.s32.totalorder %s14, 0
      %p30 = por %p28, %p29
      %p31 = scmp.ne.s32.totalorder %s19, %s20
      %p32 = scmp.eq.s32.totalorder %s15, 1
      %p33 = por %p31, %p32
      %p35 = scmp.ne.s32.totalorder %s20, %s34
      %p36 = scmp.eq.s32.totalorder %s15, 0
      %p37 = por %p35, %p36
      %s38 = ssub.s32 %s9, %s16
      %p39 = scmp.eq.s32.totalorder %s38, 0
      %s41 = sadd.s32 %s40, 1
      %s42 = scalar_select %p39, %s40, %s41
      %p45 = pneg %p39
      %p46 = scmp.eq.s32.totalorder %s9, 1
      %p47 = por %p45, %p46
      %p48 = scmp.ne.s32.totalorder %s40, %s43
      %p49 = scmp.eq.s32.totalorder %s9, 0
      %p50 = por %p48, %p49
      %p51 = scmp.ne.s32.totalorder %s40, %s43
      %p52 = scmp.eq.s32.totalorder %s14, 1
      %p53 = por %p51, %p52
      %p54 = scmp.ne.s32.totalorder %s43, %s44
      %p55 = scmp.eq.s32.totalorder %s14, 0
      %p56 = por %p54, %p55
      %p57 = scmp.ne.s32.totalorder %s43, %s44
      %p58 = scmp.eq.s32.totalorder %s15, 1
      %p59 = por %p57, %p58
      %p61 = scmp.ne.s32.totalorder %s44, %s60
      %p62 = scmp.eq.s32.totalorder %s15, 0
      %p63 = por %p61, %p62
      %s65 = sadd.s32 %s64, 1
      %p68 = scmp.eq.s32.totalorder %s9, 1
      %p69 = scmp.ne.s32.totalorder %s64, %s66
      %p70 = scmp.eq.s32.totalorder %s9, 0
      %p71 = por %p69, %p70
      %p72 = scmp.ne.s32.totalorder %s64, %s66
      %p73 = scmp.eq.s32.totalorder %s14, 1
      %p74 = por %p72, %p73
      %p75 = scmp.ne.s32.totalorder %s66, %s67
      %p76 = scmp.eq.s32.totalorder %s14, 0
      %p77 = por %p75, %p76
      %p78 = scmp.ne.s32.totalorder %s66, %s67
      %p79 = scmp.eq.s32.totalorder %s15, 1
      %p80 = por %p78, %p79
      %p82 = scmp.ne.s32.totalorder %s67, %s81
      %p83 = scmp.eq.s32.totalorder %s15, 0
      %p84 = por %p82, %p83
      %s85 = ssub.s32 %s9, %s16
      %p86 = scmp.eq.s32.totalorder %s85, 0
      %s88 = sadd.s32 %s87, 1
      %s89 = scalar_select %p86, %s87, %s88
      %p92 = pneg %p86
      %p93 = scmp.eq.s32.totalorder %s9, 1
      %p94 = por %p92, %p93
      %p95 = scmp.ne.s32.totalorder %s87, %s90
      %p96 = scmp.eq.s32.totalorder %s9, 0
      %p97 = por %p95, %p96
      %p98 = scmp.ne.s32.totalorder %s87, %s90
      %p99 = scmp.eq.s32.totalorder %s14, 1
      %p100 = por %p98, %p99
      %p101 = scmp.ne.s32.totalorder %s90, %s91
      %p102 = scmp.eq.s32.totalorder %s14, 0
      %p103 = por %p101, %p102
      %p104 = scmp.ne.s32.totalorder %s90, %s91
      %p105 = scmp.eq.s32.totalorder %s15, 1
      %p106 = por %p104, %p105
      %p108 = scmp.ne.s32.totalorder %s91, %s107
      %p109 = scmp.eq.s32.totalorder %s15, 0
      %p110 = por %p108, %p109
      %p111 = scmp.le.s32.totalorder 1, %s9
      %p112 = scmp.lt.s32.totalorder %s9, 3
      %p113 = pnand %p111, %p112
      %p114 = pneg %p113
      // Predicated region
      $region9: #{tpu_custom_call.1} parent=5 // pred_check
        _
      $region10: #{tpu_custom_call.1} parent=5 // pred_check_branch
        %116 = sbr.rel (%p113) target = $region12
      $region11: #{tpu_custom_call.1} parent=5 // pred_region
        %s117 = ssub.s32 %s9, 1
        // Predicated region
        $region13: #{tpu_custom_call.1} parent=11 // pred_check
          %p118 = pneg %p30
        $region14: #{tpu_custom_call.1} parent=11 // pred_check_branch
          %120 = sbr.rel (%p118) target = $region16
        $region15: #{tpu_custom_call.1} parent=11 // pred_region
          _
        $region16: #{tpu_custom_call.1} parent=11 // pred_fallthru
          _
        // Predicated region
        $region17: #{tpu_custom_call.1} parent=11 // pred_check
          %p121 = pneg %p77
        $region18: #{tpu_custom_call.1} parent=11 // pred_check_branch
          %123 = sbr.rel (%p121) target = $region20
        $region19: #{tpu_custom_call.1} parent=11 // pred_region
          _
        $region20: #{tpu_custom_call.1} parent=11 // pred_fallthru
          _
      $region12: #{tpu_custom_call.1} parent=5 // pred_fallthru
        _
      %p124 = scmp.lt.s32.totalorder %s9, 2
      // Predicated region
      $region21: #{tpu_custom_call.1} parent=5 // pred_check
        %p125 = pneg %p124
      $region22: #{tpu_custom_call.1} parent=5 // pred_check_branch
        %127 = sbr.rel (%p125) target = $region24
      $region23: #{tpu_custom_call.1} parent=5 // pred_region
        // Predicated region
        $region25: #{tpu_custom_call.1} parent=23 // pred_check
          %p128 = pneg %p50
        $region26: #{tpu_custom_call.1} parent=23 // pred_check_branch
          %130 = sbr.rel (%p128) target = $region28
        $region27: #{tpu_custom_call.1} parent=23 // pred_region
          %p131 = scmp.lt.s32.totalorder %s9, 1
          %s132 = scalar_select %p131, %s9, 1
          %s133 = smul.addr %s132, 2
          %s134 = scalar_lea.vmem %s1, %s133
        $region28: #{tpu_custom_call.1} parent=23 // pred_fallthru
          _
      $region24: #{tpu_custom_call.1} parent=5 // pred_fallthru
        _
      %p135 = scmp.le.s32.totalorder 1, %s9
      %p136 = scmp.lt.s32.totalorder %s9, 3
      %p137 = pnand %p135, %p136
      %p138 = pneg %p137
      // Predicated region
      $region29: #{tpu_custom_call.1} parent=5 // pred_check
        _
      $region30: #{tpu_custom_call.1} parent=5 // pred_check_branch
        %140 = sbr.rel (%p137) target = $region32
      $region31: #{tpu_custom_call.1} parent=5 // pred_region
        %s141 = ssub.s32 %s9, 1
        %p142 = pneg %p30
        %p143 = pneg %p27
        %p144 = scmp.lt.s32.totalorder %s14, 1
        %s145 = scalar_select %p144, %s14, 1
        %s146 = smul.addr %s145, 2
        %s147 = scalar_lea.vmem %s1, %s146
        %p148 = pneg %p56
        %p149 = pneg %p53
        %p150 = pneg %p77
        %p151 = pneg %p74
        %p152 = pneg %p103
        %p153 = pneg %p100
        %s154 = sand.u32 %s90, 1
        %s155 = sand.u32 %s90, 1
        %s156 = smul.addr %s155, 512
        %s157 = scalar_lea.vmem [#allocation2], %s156
        %p158 = scmp.lt.s32.totalorder %s14, 1
        %s159 = scalar_select %p158, %s14, 1
        %s160 = smul.addr %s159, 2
        %s161 = scalar_lea.vmem %s1, %s160
        %v163 = vld [vmem:[%s0] sm:$0xf]
        %v164 = vld [vmem:[%s0 + $0x4] sm:$0xf]
        %v165 = vld [vmem:[%s0 + $0x8] sm:$0xf]
        %v166 = vld [vmem:[%s0 + $0xc] sm:$0xf]
        %v167 = vld [vmem:[%s0 + $0x10] sm:$0xf]
        %v168 = vld [vmem:[%s0 + $0x14] sm:$0xf]
        %v169 = vld [vmem:[%s0 + $0x18] sm:$0xf]
        %v170 = vld [vmem:[%s0 + $0x1c] sm:$0xf]
        %v171 = vld [vmem:[%s0 + $0x20] sm:$0xf]
        %v172 = vld [vmem:[%s0 + $0x24] sm:$0xf]
        %v173 = vld [vmem:[%s0 + $0x28] sm:$0xf]
        %v174 = vld [vmem:[%s0 + $0x2c] sm:$0xf]
        %v175 = vld [vmem:[%s0 + $0x30] sm:$0xf]
        %v176 = vld [vmem:[%s0 + $0x34] sm:$0xf]
        %v177 = vld [vmem:[%s0 + $0x38] sm:$0xf]
        %v178 = vld [vmem:[%s0 + $0x3c] sm:$0xf]
        %v179 = vld [vmem:[%s0 + $0x40] sm:$0xf]
        %v180 = vld [vmem:[%s0 + $0x44] sm:$0xf]
        %v181 = vld [vmem:[%s0 + $0x48] sm:$0xf]
        %v182 = vld [vmem:[%s0 + $0x4c] sm:$0xf]
        %v183 = vld [vmem:[%s0 + $0x50] sm:$0xf]
        %v184 = vld [vmem:[%s0 + $0x54] sm:$0xf]
        %v185 = vld [vmem:[%s0 + $0x58] sm:$0xf]
        %v186 = vld [vmem:[%s0 + $0x5c] sm:$0xf]
        %v187 = vld [vmem:[%s0 + $0x60] sm:$0xf]
        %v188 = vld [vmem:[%s0 + $0x64] sm:$0xf]
        %v189 = vld [vmem:[%s0 + $0x68] sm:$0xf]
        %v190 = vld [vmem:[%s0 + $0x6c] sm:$0xf]
        %v191 = vld [vmem:[%s0 + $0x70] sm:$0xf]
        %v192 = vld [vmem:[%s0 + $0x74] sm:$0xf]
        %v193 = vld [vmem:[%s0 + $0x78] sm:$0xf]
        %v194 = vld [vmem:[%s0 + $0x7c] sm:$0xf]
        %v195 = vld [vmem:[%s0 + $0x80] sm:$0xf]
        %v196 = vld [vmem:[%s0 + $0x84] sm:$0xf]
        %v197 = vld [vmem:[%s0 + $0x88] sm:$0xf]
        %v198 = vld [vmem:[%s0 + $0x8c] sm:$0xf]
        %v199 = vld [vmem:[%s0 + $0x90] sm:$0xf]
        %v200 = vld [vmem:[%s0 + $0x94] sm:$0xf]
        %v201 = vld [vmem:[%s0 + $0x98] sm:$0xf]
        %v202 = vld [vmem:[%s0 + $0x9c] sm:$0xf]
        %v203 = vld [vmem:[%s0 + $0xa0] sm:$0xf]
        %v204 = vld [vmem:[%s0 + $0xa4] sm:$0xf]
        %v205 = vld [vmem:[%s0 + $0xa8] sm:$0xf]
        %v206 = vld [vmem:[%s0 + $0xac] sm:$0xf]
        %v207 = vld [vmem:[%s0 + $0xb0] sm:$0xf]
        %v208 = vld [vmem:[%s0 + $0xb4] sm:$0xf]
        %v209 = vld [vmem:[%s0 + $0xb8] sm:$0xf]
        %v210 = vld [vmem:[%s0 + $0xbc] sm:$0xf]
        %v211 = vld [vmem:[%s0 + $0xc0] sm:$0xf]
        %v212 = vld [vmem:[%s0 + $0xc4] sm:$0xf]
        %v213 = vld [vmem:[%s0 + $0xc8] sm:$0xf]
        %v214 = vld [vmem:[%s0 + $0xcc] sm:$0xf]
        %v215 = vld [vmem:[%s0 + $0xd0] sm:$0xf]
        %v216 = vld [vmem:[%s0 + $0xd4] sm:$0xf]
        %v217 = vld [vmem:[%s0 + $0xd8] sm:$0xf]
        %v218 = vld [vmem:[%s0 + $0xdc] sm:$0xf]
        %v219 = vld [vmem:[%s0 + $0xe0] sm:$0xf]
        %v220 = vld [vmem:[%s0 + $0xe4] sm:$0xf]
        %v221 = vld [vmem:[%s0 + $0xe8] sm:$0xf]
        %v222 = vld [vmem:[%s0 + $0xec] sm:$0xf]
        %v223 = vld [vmem:[%s0 + $0xf0] sm:$0xf]
        %v224 = vld [vmem:[%s0 + $0xf4] sm:$0xf]
        %v225 = vld [vmem:[%s0 + $0xf8] sm:$0xf]
        %v226 = vld [vmem:[%s0 + $0xfc] sm:$0xf]
        %v227 = vld [vmem:[%s161] sm:$0x3]
        %v228 = vld [vmem:[%s2] sm:$0x1]
        %v230 = vlaneseq
        %v231 = vshrl.u32 %v230, 7
        %v232 = vsub.s32 0, %v231
        %v233 = vrot.slane %v228, %v232
        %v299 = vunpack.c.l.b16 %v163
        %v300 = vunpack.c.l.b16 %v164
        %v301 = vunpack.c.l.b16 %v165
        %v302 = vunpack.c.l.b16 %v166
        %v303 = vunpack.c.l.b16 %v167
        %v304 = vunpack.c.l.b16 %v168
        %v305 = vunpack.c.l.b16 %v169
        %v306 = vunpack.c.l.b16 %v170
        %v307 = vunpack.c.l.b16 %v171
        %v308 = vunpack.c.l.b16 %v172
        %v309 = vunpack.c.l.b16 %v173
        %v310 = vunpack.c.l.b16 %v174
        %v311 = vunpack.c.l.b16 %v175
        %v312 = vunpack.c.l.b16 %v176
        %v313 = vunpack.c.l.b16 %v177
        %v314 = vunpack.c.l.b16 %v178
        %v315 = vunpack.c.l.b16 %v179
        %v316 = vunpack.c.l.b16 %v180
        %v317 = vunpack.c.l.b16 %v181
        %v318 = vunpack.c.l.b16 %v182
        %v319 = vunpack.c.l.b16 %v183
        %v320 = vunpack.c.l.b16 %v184
        %v321 = vunpack.c.l.b16 %v185
        %v322 = vunpack.c.l.b16 %v186
        %v323 = vunpack.c.l.b16 %v187
        %v324 = vunpack.c.l.b16 %v188
        %v325 = vunpack.c.l.b16 %v189
        %v326 = vunpack.c.l.b16 %v190
        %v327 = vunpack.c.l.b16 %v191
        %v328 = vunpack.c.l.b16 %v192
        %v329 = vunpack.c.l.b16 %v193
        %v330 = vunpack.c.l.b16 %v194
        %v331 = vunpack.c.l.b16 %v195
        %v332 = vunpack.c.l.b16 %v196
        %v333 = vunpack.c.l.b16 %v197
        %v334 = vunpack.c.l.b16 %v198
        %v335 = vunpack.c.l.b16 %v199
        %v336 = vunpack.c.l.b16 %v200
        %v337 = vunpack.c.l.b16 %v201
        %v338 = vunpack.c.l.b16 %v202
        %v339 = vunpack.c.l.b16 %v203
        %v340 = vunpack.c.l.b16 %v204
        %v341 = vunpack.c.l.b16 %v205
        %v342 = vunpack.c.l.b16 %v206
        %v343 = vunpack.c.l.b16 %v207
        %v344 = vunpack.c.l.b16 %v208
        %v345 = vunpack.c.l.b16 %v209
        %v346 = vunpack.c.l.b16 %v210
        %v347 = vunpack.c.l.b16 %v211
        %v348 = vunpack.c.l.b16 %v212
        %v349 = vunpack.c.l.b16 %v213
        %v350 = vunpack.c.l.b16 %v214
        %v351 = vunpack.c.l.b16 %v215
        %v352 = vunpack.c.l.b16 %v216
        %v353 = vunpack.c.l.b16 %v217
        %v354 = vunpack.c.l.b16 %v218
        %v355 = vunpack.c.l.b16 %v219
        %v356 = vunpack.c.l.b16 %v220
        %v357 = vunpack.c.l.b16 %v221
        %v358 = vunpack.c.l.b16 %v222
        %v359 = vunpack.c.l.b16 %v223
        %v360 = vunpack.c.l.b16 %v224
        %v361 = vunpack.c.l.b16 %v225
        %v362 = vunpack.c.l.b16 %v226
        %v363 = vpack.c.b16 %v300, %v299
        %v364 = vpack.c.b16 %v302, %v301
        %v365 = vpack.c.b16 %v304, %v303
        %v366 = vpack.c.b16 %v306, %v305
        %v367 = vpack.c.b16 %v308, %v307
        %v368 = vpack.c.b16 %v310, %v309
        %v369 = vpack.c.b16 %v312, %v311
        %v370 = vpack.c.b16 %v314, %v313
        %v371 = vpack.c.b16 %v316, %v315
        %v372 = vpack.c.b16 %v318, %v317
        %v373 = vpack.c.b16 %v320, %v319
        %v374 = vpack.c.b16 %v322, %v321
        %v375 = vpack.c.b16 %v324, %v323
        %v376 = vpack.c.b16 %v326, %v325
        %v377 = vpack.c.b16 %v328, %v327
        %v378 = vpack.c.b16 %v330, %v329
        %v379 = vpack.c.b16 %v332, %v331
        %v380 = vpack.c.b16 %v334, %v333
        %v381 = vpack.c.b16 %v336, %v335
        %v382 = vpack.c.b16 %v338, %v337
        %v383 = vpack.c.b16 %v340, %v339
        %v384 = vpack.c.b16 %v342, %v341
        %v385 = vpack.c.b16 %v344, %v343
        %v386 = vpack.c.b16 %v346, %v345
        %v387 = vpack.c.b16 %v348, %v347
        %v388 = vpack.c.b16 %v350, %v349
        %v389 = vpack.c.b16 %v352, %v351
        %v390 = vpack.c.b16 %v354, %v353
        %v391 = vpack.c.b16 %v356, %v355
        %v392 = vpack.c.b16 %v358, %v357
        %v393 = vpack.c.b16 %v360, %v359
        %v394 = vpack.c.b16 %v362, %v361
        %vm395 = vcmask 31744
        %v397 = vsel %vm395, %v363, 0
        %v400 = vsel %vm395, %v364, 0
        %v403 = vsel %vm395, %v365, 0
        %v406 = vsel %vm395, %v366, 0
        %v409 = vsel %vm395, %v367, 0
        %v412 = vsel %vm395, %v368, 0
        %v415 = vsel %vm395, %v369, 0
        %v418 = vsel %vm395, %v370, 0
        %v421 = vsel %vm395, %v371, 0
        %v424 = vsel %vm395, %v372, 0
        %v427 = vsel %vm395, %v373, 0
        %v430 = vsel %vm395, %v374, 0
        %v433 = vsel %vm395, %v375, 0
        %v436 = vsel %vm395, %v376, 0
        %v439 = vsel %vm395, %v377, 0
        %v442 = vsel %vm395, %v378, 0
        %v445 = vsel %vm395, %v379, 0
        %v448 = vsel %vm395, %v380, 0
        %v451 = vsel %vm395, %v381, 0
        %v454 = vsel %vm395, %v382, 0
        %v457 = vsel %vm395, %v383, 0
        %v460 = vsel %vm395, %v384, 0
        %v463 = vsel %vm395, %v385, 0
        %v466 = vsel %vm395, %v386, 0
        %v469 = vsel %vm395, %v387, 0
        %v472 = vsel %vm395, %v388, 0
        %v475 = vsel %vm395, %v389, 0
        %v478 = vsel %vm395, %v390, 0
        %v481 = vsel %vm395, %v391, 0
        %v484 = vsel %vm395, %v392, 0
        %v487 = vsel %vm395, %v393, 0
        %v490 = vsel %vm395, %v394, 0
        %vm492 = vcmask 1041408
        %v494 = vsel %vm492, %v227, 0
        %496 = vmatprep.subr.bf16.mxu0 0
        %497 = vmatpush1.bf16.msra.mxu0 %v494
        %498 = vmatprep.subr.bf16.mxu0 0
        %499 = vmatpush1.bf16.msra.mxu0 0
        %500 = vmatprep.subr.bf16.mxu0 0
        %501 = vmatpush1.bf16.msra.mxu0 0
        %502 = vmatprep.subr.bf16.mxu0 0
        %503 = vmatpush1.bf16.msra.mxu0 0
        %504 = vmatprep.subr.bf16.mxu0 0
        %505 = vmatpush1.bf16.msra.mxu0 0
        %506 = vmatprep.subr.bf16.mxu0 0
        %507 = vmatpush1.bf16.msra.mxu0 0
        %508 = vmatprep.subr.bf16.mxu0 0
        %509 = vmatpush1.bf16.msra.mxu0 0
        %510 = vmatprep.subr.bf16.mxu0 0
        %511 = vmatpush1.bf16.msra.mxu0 0
        %512 = vmatprep.subr.bf16.mxu0 0
        %513 = vmatpush1.bf16.msra.mxu0 0
        %514 = vmatprep.subr.bf16.mxu0 0
        %515 = vmatpush1.bf16.msra.mxu0 0
        %516 = vmatprep.subr.bf16.mxu0 0
        %517 = vmatpush1.bf16.msra.mxu0 0
        %518 = vmatprep.subr.bf16.mxu0 0
        %519 = vmatpush1.bf16.msra.mxu0 0
        %520 = vmatprep.subr.bf16.mxu0 0
        %521 = vmatpush1.bf16.msra.mxu0 0
        %522 = vmatprep.subr.bf16.mxu0 0
        %523 = vmatpush1.bf16.msra.mxu0 0
        %524 = vmatprep.subr.bf16.mxu0 0
        %525 = vmatpush1.bf16.msra.mxu0 0
        %526 = vmatprep.subr.bf16.mxu0 0
        %527 = vmatpush1.bf16.msra.mxu0 0
        %528 = vmatprep.mubr.bf16.mxu0 0
        %529 = vmatmul.mubr.bf16.gmra.mrb[0].mxu0 %v397
        %v530 = vpop.f32.mrb[0].mxu0
        %v531 = vadd.f32 %v233, %v530
        %v532 = vpop.f32.mrb[0].mxu0
        %v533 = vpop.f32.mrb[0].mxu0
        %v534 = vadd.f32 %v233, %v533
        %v535 = vpop.f32.mrb[0].mxu0
        %536 = vmatprep.mubr.bf16.mxu0 0
        %537 = vmatmul.mubr.bf16.gmra.mrb[0].mxu0 %v400
        %v538 = vpop.f32.mrb[0].mxu0
        %v539 = vadd.f32 %v233, %v538
        %v540 = vpop.f32.mrb[0].mxu0
        %v541 = vpop.f32.mrb[0].mxu0
        %v542 = vadd.f32 %v233, %v541
        %v543 = vpop.f32.mrb[0].mxu0
        %544 = vmatprep.mubr.bf16.mxu0 0
        %545 = vmatmul.mubr.bf16.gmra.mrb[0].mxu0 %v403
        %v546 = vpop.f32.mrb[0].mxu0
        %v547 = vadd.f32 %v233, %v546
        %v548 = vpop.f32.mrb[0].mxu0
        %v549 = vpop.f32.mrb[0].mxu0
        %v550 = vadd.f32 %v233, %v549
        %v551 = vpop.f32.mrb[0].mxu0
        %552 = vmatprep.mubr.bf16.mxu0 0
        %553 = vmatmul.mubr.bf16.gmra.mrb[0].mxu0 %v406
        %v554 = vpop.f32.mrb[0].mxu0
        %v555 = vadd.f32 %v233, %v554
        %v556 = vpop.f32.mrb[0].mxu0
        %v557 = vpop.f32.mrb[0].mxu0
        %v558 = vadd.f32 %v233, %v557
        %v559 = vpop.f32.mrb[0].mxu0
        %560 = vmatprep.mubr.bf16.mxu0 0
        %561 = vmatmul.mubr.bf16.gmra.mrb[0].mxu0 %v409
        %v562 = vpop.f32.mrb[0].mxu0
        %v563 = vadd.f32 %v233, %v562
        %v564 = vpop.f32.mrb[0].mxu0
        %v565 = vpop.f32.mrb[0].mxu0
        %v566 = vadd.f32 %v233, %v565
        %v567 = vpop.f32.mrb[0].mxu0
        %568 = vmatprep.mubr.bf16.mxu0 0
        %569 = vmatmul.mubr.bf16.gmra.mrb[0].mxu0 %v412
        %v570 = vpop.f32.mrb[0].mxu0
        %v571 = vadd.f32 %v233, %v570
        %v572 = vpop.f32.mrb[0].mxu0
        %v573 = vpop.f32.mrb[0].mxu0
        %v574 = vadd.f32 %v233, %v573
        %v575 = vpop.f32.mrb[0].mxu0
        %576 = vmatprep.mubr.bf16.mxu0 0
        %577 = vmatmul.mubr.bf16.gmra.mrb[0].mxu0 %v415
        %v578 = vpop.f32.mrb[0].mxu0
        %v579 = vadd.f32 %v233, %v578
        %v580 = vpop.f32.mrb[0].mxu0
        %v581 = vpop.f32.mrb[0].mxu0
        %v582 = vadd.f32 %v233, %v581
        %v583 = vpop.f32.mrb[0].mxu0
        %584 = vmatprep.mubr.bf16.mxu0 0
        %585 = vmatmul.mubr.bf16.gmra.mrb[0].mxu0 %v418
        %v586 = vpop.f32.mrb[0].mxu0
        %v587 = vadd.f32 %v233, %v586
        %v588 = vpop.f32.mrb[0].mxu0
        %v589 = vpop.f32.mrb[0].mxu0
        %v590 = vadd.f32 %v233, %v589
        %v591 = vpop.f32.mrb[0].mxu0
        %592 = vmatprep.mubr.bf16.mxu0 0
        %593 = vmatmul.mubr.bf16.gmra.mrb[0].mxu0 %v421
        %v594 = vpop.f32.mrb[0].mxu0
        %v595 = vadd.f32 %v233, %v594
        %v596 = vpop.f32.mrb[0].mxu0
        %v597 = vpop.f32.mrb[0].mxu0
        %v598 = vadd.f32 %v233, %v597
        %v599 = vpop.f32.mrb[0].mxu0
        %600 = vmatprep.mubr.bf16.mxu0 0
        %601 = vmatmul.mubr.bf16.gmra.mrb[0].mxu0 %v424
        %v602 = vpop.f32.mrb[0].mxu0
        %v603 = vadd.f32 %v233, %v602
        %v604 = vpop.f32.mrb[0].mxu0
        %v605 = vpop.f32.mrb[0].mxu0
        %v606 = vadd.f32 %v233, %v605
        %v607 = vpop.f32.mrb[0].mxu0
        %608 = vmatprep.mubr.bf16.mxu0 0
        %609 = vmatmul.mubr.bf16.gmra.mrb[0].mxu0 %v427
        %v610 = vpop.f32.mrb[0].mxu0
        %v611 = vadd.f32 %v233, %v610
        %v612 = vpop.f32.mrb[0].mxu0
        %v613 = vpop.f32.mrb[0].mxu0
        %v614 = vadd.f32 %v233, %v613
        %v615 = vpop.f32.mrb[0].mxu0
        %616 = vmatprep.mubr.bf16.mxu0 0
        %617 = vmatmul.mubr.bf16.gmra.mrb[0].mxu0 %v430
        %v618 = vpop.f32.mrb[0].mxu0
        %v619 = vadd.f32 %v233, %v618
        %v620 = vpop.f32.mrb[0].mxu0
        %v621 = vpop.f32.mrb[0].mxu0
        %v622 = vadd.f32 %v233, %v621
        %v623 = vpop.f32.mrb[0].mxu0
        %624 = vmatprep.mubr.bf16.mxu0 0
        %625 = vmatmul.mubr.bf16.gmra.mrb[0].mxu0 %v433
        %v626 = vpop.f32.mrb[0].mxu0
        %v627 = vadd.f32 %v233, %v626
        %v628 = vpop.f32.mrb[0].mxu0
        %v629 = vpop.f32.mrb[0].mxu0
        %v630 = vadd.f32 %v233, %v629
        %v631 = vpop.f32.mrb[0].mxu0
        %632 = vmatprep.mubr.bf16.mxu0 0
        %633 = vmatmul.mubr.bf16.gmra.mrb[0].mxu0 %v436
        %v634 = vpop.f32.mrb[0].mxu0
        %v635 = vadd.f32 %v233, %v634
        %v636 = vpop.f32.mrb[0].mxu0
        %v637 = vpop.f32.mrb[0].mxu0
        %v638 = vadd.f32 %v233, %v637
        %v639 = vpop.f32.mrb[0].mxu0
        %640 = vmatprep.mubr.bf16.mxu0 0
        %641 = vmatmul.mubr.bf16.gmra.mrb[0].mxu0 %v439
        %v642 = vpop.f32.mrb[0].mxu0
        %v643 = vadd.f32 %v233, %v642
        %v644 = vpop.f32.mrb[0].mxu0
        %v645 = vpop.f32.mrb[0].mxu0
        %v646 = vadd.f32 %v233, %v645
        %v647 = vpop.f32.mrb[0].mxu0
        %648 = vmatprep.mubr.bf16.mxu0 0
        %649 = vmatmul.mubr.bf16.gmra.mrb[0].mxu0 %v442
        %v650 = vpop.f32.mrb[0].mxu0
        %v651 = vadd.f32 %v233, %v650
        %v652 = vpop.f32.mrb[0].mxu0
        %v653 = vpop.f32.mrb[0].mxu0
        %v654 = vadd.f32 %v233, %v653
        %v655 = vpop.f32.mrb[0].mxu0
        %656 = vmatprep.mubr.bf16.mxu0 0
        %657 = vmatmul.mubr.bf16.gmra.mrb[0].mxu0 %v445
        %v658 = vpop.f32.mrb[0].mxu0
        %v659 = vadd.f32 %v233, %v658
        %v660 = vpop.f32.mrb[0].mxu0
        %v661 = vpop.f32.mrb[0].mxu0
        %v662 = vadd.f32 %v233, %v661
        %v663 = vpop.f32.mrb[0].mxu0
        %664 = vmatprep.mubr.bf16.mxu0 0
        %665 = vmatmul.mubr.bf16.gmra.mrb[0].mxu0 %v448
        %v666 = vpop.f32.mrb[0].mxu0
        %v667 = vadd.f32 %v233, %v666
        %v668 = vpop.f32.mrb[0].mxu0
        %v669 = vpop.f32.mrb[0].mxu0
        %v670 = vadd.f32 %v233, %v669
        %v671 = vpop.f32.mrb[0].mxu0
        %672 = vmatprep.mubr.bf16.mxu0 0
        %673 = vmatmul.mubr.bf16.gmra.mrb[0].mxu0 %v451
        %v674 = vpop.f32.mrb[0].mxu0
        %v675 = vadd.f32 %v233, %v674
        %v676 = vpop.f32.mrb[0].mxu0
        %v677 = vpop.f32.mrb[0].mxu0
        %v678 = vadd.f32 %v233, %v677
        %v679 = vpop.f32.mrb[0].mxu0
        %680 = vmatprep.mubr.bf16.mxu0 0
        %681 = vmatmul.mubr.bf16.gmra.mrb[0].mxu0 %v454
        %v682 = vpop.f32.mrb[0].mxu0
        %v683 = vadd.f32 %v233, %v682
        %v684 = vpop.f32.mrb[0].mxu0
        %v685 = vpop.f32.mrb[0].mxu0
        %v686 = vadd.f32 %v233, %v685
        %v687 = vpop.f32.mrb[0].mxu0
        %688 = vmatprep.mubr.bf16.mxu0 0
        %689 = vmatmul.mubr.bf16.gmra.mrb[0].mxu0 %v457
        %v690 = vpop.f32.mrb[0].mxu0
        %v691 = vadd.f32 %v233, %v690
        %v692 = vpop.f32.mrb[0].mxu0
        %v693 = vpop.f32.mrb[0].mxu0
        %v694 = vadd.f32 %v233, %v693
        %v695 = vpop.f32.mrb[0].mxu0
        %696 = vmatprep.mubr.bf16.mxu0 0
        %697 = vmatmul.mubr.bf16.gmra.mrb[0].mxu0 %v460
        %v698 = vpop.f32.mrb[0].mxu0
        %v699 = vadd.f32 %v233, %v698
        %v700 = vpop.f32.mrb[0].mxu0
        %v701 = vpop.f32.mrb[0].mxu0
        %v702 = vadd.f32 %v233, %v701
        %v703 = vpop.f32.mrb[0].mxu0
        %704 = vmatprep.mubr.bf16.mxu0 0
        %705 = vmatmul.mubr.bf16.gmra.mrb[0].mxu0 %v463
        %v706 = vpop.f32.mrb[0].mxu0
        %v707 = vadd.f32 %v233, %v706
        %v708 = vpop.f32.mrb[0].mxu0
        %v709 = vpop.f32.mrb[0].mxu0
        %v710 = vadd.f32 %v233, %v709
        %v711 = vpop.f32.mrb[0].mxu0
        %712 = vmatprep.mubr.bf16.mxu0 0
        %713 = vmatmul.mubr.bf16.gmra.mrb[0].mxu0 %v466
        %v714 = vpop.f32.mrb[0].mxu0
        %v715 = vadd.f32 %v233, %v714
        %v716 = vpop.f32.mrb[0].mxu0
        %v717 = vpop.f32.mrb[0].mxu0
        %v718 = vadd.f32 %v233, %v717
        %v719 = vpop.f32.mrb[0].mxu0
        %720 = vmatprep.mubr.bf16.mxu0 0
        %721 = vmatmul.mubr.bf16.gmra.mrb[0].mxu0 %v469
        %v722 = vpop.f32.mrb[0].mxu0
        %v723 = vadd.f32 %v233, %v722
        %v724 = vpop.f32.mrb[0].mxu0
        %v725 = vpop.f32.mrb[0].mxu0
        %v726 = vadd.f32 %v233, %v725
        %v727 = vpop.f32.mrb[0].mxu0
        %728 = vmatprep.mubr.bf16.mxu0 0
        %729 = vmatmul.mubr.bf16.gmra.mrb[0].mxu0 %v472
        %v730 = vpop.f32.mrb[0].mxu0
        %v731 = vadd.f32 %v233, %v730
        %v732 = vpop.f32.mrb[0].mxu0
        %v733 = vpop.f32.mrb[0].mxu0
        %v734 = vadd.f32 %v233, %v733
        %v735 = vpop.f32.mrb[0].mxu0
        %736 = vmatprep.mubr.bf16.mxu0 0
        %737 = vmatmul.mubr.bf16.gmra.mrb[0].mxu0 %v475
        %v738 = vpop.f32.mrb[0].mxu0
        %v739 = vadd.f32 %v233, %v738
        %v740 = vpop.f32.mrb[0].mxu0
        %v741 = vpop.f32.mrb[0].mxu0
        %v742 = vadd.f32 %v233, %v741
        %v743 = vpop.f32.mrb[0].mxu0
        %744 = vmatprep.mubr.bf16.mxu0 0
        %745 = vmatmul.mubr.bf16.gmra.mrb[0].mxu0 %v478
        %v746 = vpop.f32.mrb[0].mxu0
        %v747 = vadd.f32 %v233, %v746
        %v748 = vpop.f32.mrb[0].mxu0
        %v749 = vpop.f32.mrb[0].mxu0
        %v750 = vadd.f32 %v233, %v749
        %v751 = vpop.f32.mrb[0].mxu0
        %752 = vmatprep.mubr.bf16.mxu0 0
        %753 = vmatmul.mubr.bf16.gmra.mrb[0].mxu0 %v481
        %v754 = vpop.f32.mrb[0].mxu0
        %v755 = vadd.f32 %v233, %v754
        %v756 = vpop.f32.mrb[0].mxu0
        %v757 = vpop.f32.mrb[0].mxu0
        %v758 = vadd.f32 %v233, %v757
        %v759 = vpop.f32.mrb[0].mxu0
        %760 = vmatprep.mubr.bf16.mxu0 0
        %761 = vmatmul.mubr.bf16.gmra.mrb[0].mxu0 %v484
        %v762 = vpop.f32.mrb[0].mxu0
        %v763 = vadd.f32 %v233, %v762
        %v764 = vpop.f32.mrb[0].mxu0
        %v765 = vpop.f32.mrb[0].mxu0
        %v766 = vadd.f32 %v233, %v765
        %v767 = vpop.f32.mrb[0].mxu0
        %768 = vmatprep.mubr.bf16.mxu0 0
        %769 = vmatmul.mubr.bf16.gmra.mrb[0].mxu0 %v487
        %v770 = vpop.f32.mrb[0].mxu0
        %v771 = vadd.f32 %v233, %v770
        %v772 = vpop.f32.mrb[0].mxu0
        %v773 = vpop.f32.mrb[0].mxu0
        %v774 = vadd.f32 %v233, %v773
        %v775 = vpop.f32.mrb[0].mxu0
        %776 = vmatprep.mubr.bf16.mxu0 0
        %777 = vmatmul.mubr.bf16.gmra.mrb[0].mxu0 %v490
        %v778 = vpop.f32.mrb[0].mxu0
        %v779 = vadd.f32 %v233, %v778
        %v780 = vpop.f32.mrb[0].mxu0
        %v781 = vpop.f32.mrb[0].mxu0
        %v782 = vadd.f32 %v233, %v781
        %v783 = vpop.f32.mrb[0].mxu0
        %784 = vdwg.mxu0
        %vm785 = vcmask 64512
        %786 = vst.msk [vmem:[%s157] sm:$0xff] %vm785, %v531
        %787 = vst.msk [vmem:[%s157 + $0x8] sm:$0xff] %vm785, %v534
        %788 = vst.msk [vmem:[%s157 + $0x10] sm:$0xff] %vm785, %v539
        %789 = vst.msk [vmem:[%s157 + $0x18] sm:$0xff] %vm785, %v542
        %790 = vst.msk [vmem:[%s157 + $0x20] sm:$0xff] %vm785, %v547
        %791 = vst.msk [vmem:[%s157 + $0x28] sm:$0xff] %vm785, %v550
        %792 = vst.msk [vmem:[%s157 + $0x30] sm:$0xff] %vm785, %v555
        %793 = vst.msk [vmem:[%s157 + $0x38] sm:$0xff] %vm785, %v558
        %794 = vst.msk [vmem:[%s157 + $0x40] sm:$0xff] %vm785, %v563
        %795 = vst.msk [vmem:[%s157 + $0x48] sm:$0xff] %vm785, %v566
        %796 = vst.msk [vmem:[%s157 + $0x50] sm:$0xff] %vm785, %v571
        %797 = vst.msk [vmem:[%s157 + $0x58] sm:$0xff] %vm785, %v574
        %798 = vst.msk [vmem:[%s157 + $0x60] sm:$0xff] %vm785, %v579
        %799 = vst.msk [vmem:[%s157 + $0x68] sm:$0xff] %vm785, %v582
        %800 = vst.msk [vmem:[%s157 + $0x70] sm:$0xff] %vm785, %v587
        %801 = vst.msk [vmem:[%s157 + $0x78] sm:$0xff] %vm785, %v590
        %802 = vst.msk [vmem:[%s157 + $0x80] sm:$0xff] %vm785, %v595
        %803 = vst.msk [vmem:[%s157 + $0x88] sm:$0xff] %vm785, %v598
        %804 = vst.msk [vmem:[%s157 + $0x90] sm:$0xff] %vm785, %v603
        %805 = vst.msk [vmem:[%s157 + $0x98] sm:$0xff] %vm785, %v606
        %806 = vst.msk [vmem:[%s157 + $0xa0] sm:$0xff] %vm785, %v611
        %807 = vst.msk [vmem:[%s157 + $0xa8] sm:$0xff] %vm785, %v614
        %808 = vst.msk [vmem:[%s157 + $0xb0] sm:$0xff] %vm785, %v619
        %809 = vst.msk [vmem:[%s157 + $0xb8] sm:$0xff] %vm785, %v622
        %810 = vst.msk [vmem:[%s157 + $0xc0] sm:$0xff] %vm785, %v627
        %811 = vst.msk [vmem:[%s157 + $0xc8] sm:$0xff] %vm785, %v630
        %812 = vst.msk [vmem:[%s157 + $0xd0] sm:$0xff] %vm785, %v635
        %813 = vst.msk [vmem:[%s157 + $0xd8] sm:$0xff] %vm785, %v638
        %814 = vst.msk [vmem:[%s157 + $0xe0] sm:$0xff] %vm785, %v643
        %815 = vst.msk [vmem:[%s157 + $0xe8] sm:$0xff] %vm785, %v646
        %816 = vst.msk [vmem:[%s157 + $0xf0] sm:$0xff] %vm785, %v651
        %817 = vst.msk [vmem:[%s157 + $0xf8] sm:$0xff] %vm785, %v654
        %818 = vst.msk [vmem:[%s157 + $0x100] sm:$0xff] %vm785, %v659
        %819 = vst.msk [vmem:[%s157 + $0x108] sm:$0xff] %vm785, %v662
        %820 = vst.msk [vmem:[%s157 + $0x110] sm:$0xff] %vm785, %v667
        %821 = vst.msk [vmem:[%s157 + $0x118] sm:$0xff] %vm785, %v670
        %822 = vst.msk [vmem:[%s157 + $0x120] sm:$0xff] %vm785, %v675
        %823 = vst.msk [vmem:[%s157 + $0x128] sm:$0xff] %vm785, %v678
        %824 = vst.msk [vmem:[%s157 + $0x130] sm:$0xff] %vm785, %v683
        %825 = vst.msk [vmem:[%s157 + $0x138] sm:$0xff] %vm785, %v686
        %826 = vst.msk [vmem:[%s157 + $0x140] sm:$0xff] %vm785, %v691
        %827 = vst.msk [vmem:[%s157 + $0x148] sm:$0xff] %vm785, %v694
        %828 = vst.msk [vmem:[%s157 + $0x150] sm:$0xff] %vm785, %v699
        %829 = vst.msk [vmem:[%s157 + $0x158] sm:$0xff] %vm785, %v702
        %830 = vst.msk [vmem:[%s157 + $0x160] sm:$0xff] %vm785, %v707
        %831 = vst.msk [vmem:[%s157 + $0x168] sm:$0xff] %vm785, %v710
        %832 = vst.msk [vmem:[%s157 + $0x170] sm:$0xff] %vm785, %v715
        %833 = vst.msk [vmem:[%s157 + $0x178] sm:$0xff] %vm785, %v718
        %834 = vst.msk [vmem:[%s157 + $0x180] sm:$0xff] %vm785, %v723
        %835 = vst.msk [vmem:[%s157 + $0x188] sm:$0xff] %vm785, %v726
        %836 = vst.msk [vmem:[%s157 + $0x190] sm:$0xff] %vm785, %v731
        %837 = vst.msk [vmem:[%s157 + $0x198] sm:$0xff] %vm785, %v734
        %838 = vst.msk [vmem:[%s157 + $0x1a0] sm:$0xff] %vm785, %v739
        %839 = vst.msk [vmem:[%s157 + $0x1a8] sm:$0xff] %vm785, %v742
        %840 = vst.msk [vmem:[%s157 + $0x1b0] sm:$0xff] %vm785, %v747
        %841 = vst.msk [vmem:[%s157 + $0x1b8] sm:$0xff] %vm785, %v750
        %842 = vst.msk [vmem:[%s157 + $0x1c0] sm:$0xff] %vm785, %v755
        %843 = vst.msk [vmem:[%s157 + $0x1c8] sm:$0xff] %vm785, %v758
        %844 = vst.msk [vmem:[%s157 + $0x1d0] sm:$0xff] %vm785, %v763
        %845 = vst.msk [vmem:[%s157 + $0x1d8] sm:$0xff] %vm785, %v766
        %846 = vst.msk [vmem:[%s157 + $0x1e0] sm:$0xff] %vm785, %v771
        %847 = vst.msk [vmem:[%s157 + $0x1e8] sm:$0xff] %vm785, %v774
        %848 = vst.msk [vmem:[%s157 + $0x1f0] sm:$0xff] %vm785, %v779
        %849 = vst.msk [vmem:[%s157 + $0x1f8] sm:$0xff] %vm785, %v782
        %s850 = sand.u32 %s90, 1
        %s851 = sand.u32 %s90, 1
        %s852 = smul.addr %s851, 512
        %s853 = scalar_lea.vmem [#allocation2], %s852
        // Predicated region
        $region33: #{tpu_custom_call.1} parent=31 // pred_check
          %p854 = pneg %p100
        $region34: #{tpu_custom_call.1} parent=31 // pred_check_branch
          %856 = sbr.rel (%p854) target = $region36
        $region35: #{tpu_custom_call.1} parent=31 // pred_region
          %s857 = smul.addr %s14, 2
          %s858 = smul.addr %s857, 8
          %s859 = scalar_lea.vmem %s3, %s858
          // Predicated region
          $region37: #{tpu_custom_call.1} parent=35 // pred_check
            _
          $region38: #{tpu_custom_call.1} parent=35 // pred_check_branch
            %861 = sbr.rel (0) target = $region40
          $region39: #{tpu_custom_call.1} parent=35 // pred_region
            // Predicated region
            $region41: #{tpu_custom_call.1} parent=39 // pred_check
              _
            $region42: #{tpu_custom_call.1} parent=39 // pred_check_branch
              %863 = sbr.rel (0) target = $region44
            $region43: #{tpu_custom_call.1} parent=39 // pred_region
              // Predicated region
              $region56: #{tpu_custom_call.1} parent=43 // pred_check
                _
              $region57: #{tpu_custom_call.1} parent=43 // pred_check_branch
                %1004 = sbr.rel (0) target = $region59
              $region58: #{tpu_custom_call.1} parent=43 // pred_region
                loop: start=0, step=1, limit=1
                $region60: #{tpu_custom_call.1} parent=58 // loop_pre_header
                  _
                $region61: #{tpu_custom_call.1} parent=58 // loop_header
                  %s1006 = sphi 0, %s1010
                  %p1007 = scmp.ge.s32.totalorder %s1006, 1
                  %s1011 = sphi %s853, %s853
                  %s1012 = sphi %s859, %s859
                $region62: #{tpu_custom_call.1} parent=58 // loop_header_branch
                  %1009 = sbr.rel (%p1007) target = $region66
                $region63: #{tpu_custom_call.1} parent=58 // loop_body
                  %v1013 = vld [vmem:[%s1011] sm:$0xff]
                  %1014 = vst [vmem:[%s1012] sm:$0xff] %v1013
                  %v1015 = vld [vmem:[%s1011 + $0x8] sm:$0xff]
                  %1016 = vst [vmem:[%s1012 + $0x8] sm:$0xff] %v1015
                  %v1017 = vld [vmem:[%s1011 + $0x10] sm:$0xff]
                  %1018 = vst [vmem:[%s1012 + $0x20] sm:$0xff] %v1017
                  %v1019 = vld [vmem:[%s1011 + $0x18] sm:$0xff]
                  %1020 = vst [vmem:[%s1012 + $0x28] sm:$0xff] %v1019
                  %v1021 = vld [vmem:[%s1011 + $0x20] sm:$0xff]
                  %1022 = vst [vmem:[%s1012 + $0x40] sm:$0xff] %v1021
                  %v1023 = vld [vmem:[%s1011 + $0x28] sm:$0xff]
                  %1024 = vst [vmem:[%s1012 + $0x48] sm:$0xff] %v1023
                  %v1025 = vld [vmem:[%s1011 + $0x30] sm:$0xff]
                  %1026 = vst [vmem:[%s1012 + $0x60] sm:$0xff] %v1025
                  %v1027 = vld [vmem:[%s1011 + $0x38] sm:$0xff]
                  %1028 = vst [vmem:[%s1012 + $0x68] sm:$0xff] %v1027
                  %v1029 = vld [vmem:[%s1011 + $0x40] sm:$0xff]
                  %1030 = vst [vmem:[%s1012 + $0x80] sm:$0xff] %v1029
                  %v1031 = vld [vmem:[%s1011 + $0x48] sm:$0xff]
                  %1032 = vst [vmem:[%s1012 + $0x88] sm:$0xff] %v1031
                  %v1033 = vld [vmem:[%s1011 + $0x50] sm:$0xff]
                  %1034 = vst [vmem:[%s1012 + $0xa0] sm:$0xff] %v1033
                  %v1035 = vld [vmem:[%s1011 + $0x58] sm:$0xff]
                  %1036 = vst [vmem:[%s1012 + $0xa8] sm:$0xff] %v1035
                  %v1037 = vld [vmem:[%s1011 + $0x60] sm:$0xff]
                  %1038 = vst [vmem:[%s1012 + $0xc0] sm:$0xff] %v1037
                  %v1039 = vld [vmem:[%s1011 + $0x68] sm:$0xff]
                  %1040 = vst [vmem:[%s1012 + $0xc8] sm:$0xff] %v1039
                  %v1041 = vld [vmem:[%s1011 + $0x70] sm:$0xff]
                  %1042 = vst [vmem:[%s1012 + $0xe0] sm:$0xff] %v1041
                  %v1043 = vld [vmem:[%s1011 + $0x78] sm:$0xff]
                  %1044 = vst [vmem:[%s1012 + $0xe8] sm:$0xff] %v1043
                  %v1045 = vld [vmem:[%s1011 + $0x80] sm:$0xff]
                  %1046 = vst [vmem:[%s1012 + $0x100] sm:$0xff] %v1045
                  %v1047 = vld [vmem:[%s1011 + $0x88] sm:$0xff]
                  %1048 = vst [vmem:[%s1012 + $0x108] sm:$0xff] %v1047
                  %v1049 = vld [vmem:[%s1011 + $0x90] sm:$0xff]
                  %1050 = vst [vmem:[%s1012 + $0x120] sm:$0xff] %v1049
                  %v1051 = vld [vmem:[%s1011 + $0x98] sm:$0xff]
                  %1052 = vst [vmem:[%s1012 + $0x128] sm:$0xff] %v1051
                  %v1053 = vld [vmem:[%s1011 + $0xa0] sm:$0xff]
                  %1054 = vst [vmem:[%s1012 + $0x140] sm:$0xff] %v1053
                  %v1055 = vld [vmem:[%s1011 + $0xa8] sm:$0xff]
                  %1056 = vst [vmem:[%s1012 + $0x148] sm:$0xff] %v1055
                  %v1057 = vld [vmem:[%s1011 + $0xb0] sm:$0xff]
                  %1058 = vst [vmem:[%s1012 + $0x160] sm:$0xff] %v1057
                  %v1059 = vld [vmem:[%s1011 + $0xb8] sm:$0xff]
                  %1060 = vst [vmem:[%s1012 + $0x168] sm:$0xff] %v1059
                  %v1061 = vld [vmem:[%s1011 + $0xc0] sm:$0xff]
                  %1062 = vst [vmem:[%s1012 + $0x180] sm:$0xff] %v1061
                  %v1063 = vld [vmem:[%s1011 + $0xc8] sm:$0xff]
                  %1064 = vst [vmem:[%s1012 + $0x188] sm:$0xff] %v1063
                  %v1065 = vld [vmem:[%s1011 + $0xd0] sm:$0xff]
                  %1066 = vst [vmem:[%s1012 + $0x1a0] sm:$0xff] %v1065
                  %v1067 = vld [vmem:[%s1011 + $0xd8] sm:$0xff]
                  %1068 = vst [vmem:[%s1012 + $0x1a8] sm:$0xff] %v1067
                  %v1069 = vld [vmem:[%s1011 + $0xe0] sm:$0xff]
                  %1070 = vst [vmem:[%s1012 + $0x1c0] sm:$0xff] %v1069
                  %v1071 = vld [vmem:[%s1011 + $0xe8] sm:$0xff]
                  %1072 = vst [vmem:[%s1012 + $0x1c8] sm:$0xff] %v1071
                  %v1073 = vld [vmem:[%s1011 + $0xf0] sm:$0xff]
                  %1074 = vst [vmem:[%s1012 + $0x1e0] sm:$0xff] %v1073
                  %v1075 = vld [vmem:[%s1011 + $0xf8] sm:$0xff]
                  %1076 = vst [vmem:[%s1012 + $0x1e8] sm:$0xff] %v1075
                  %v1077 = vld [vmem:[%s1011 + $0x100] sm:$0xff]
                  %1078 = vst [vmem:[%s1012 + $0x200] sm:$0xff] %v1077
                  %v1079 = vld [vmem:[%s1011 + $0x108] sm:$0xff]
                  %1080 = vst [vmem:[%s1012 + $0x208] sm:$0xff] %v1079
                  %v1081 = vld [vmem:[%s1011 + $0x110] sm:$0xff]
                  %1082 = vst [vmem:[%s1012 + $0x220] sm:$0xff] %v1081
                  %v1083 = vld [vmem:[%s1011 + $0x118] sm:$0xff]
                  %1084 = vst [vmem:[%s1012 + $0x228] sm:$0xff] %v1083
                  %v1085 = vld [vmem:[%s1011 + $0x120] sm:$0xff]
                  %1086 = vst [vmem:[%s1012 + $0x240] sm:$0xff] %v1085
                  %v1087 = vld [vmem:[%s1011 + $0x128] sm:$0xff]
                  %1088 = vst [vmem:[%s1012 + $0x248] sm:$0xff] %v1087
                  %v1089 = vld [vmem:[%s1011 + $0x130] sm:$0xff]
                  %1090 = vst [vmem:[%s1012 + $0x260] sm:$0xff] %v1089
                  %v1091 = vld [vmem:[%s1011 + $0x138] sm:$0xff]
                  %1092 = vst [vmem:[%s1012 + $0x268] sm:$0xff] %v1091
                  %v1093 = vld [vmem:[%s1011 + $0x140] sm:$0xff]
                  %1094 = vst [vmem:[%s1012 + $0x280] sm:$0xff] %v1093
                  %v1095 = vld [vmem:[%s1011 + $0x148] sm:$0xff]
                  %1096 = vst [vmem:[%s1012 + $0x288] sm:$0xff] %v1095
                  %v1097 = vld [vmem:[%s1011 + $0x150] sm:$0xff]
                  %1098 = vst [vmem:[%s1012 + $0x2a0] sm:$0xff] %v1097
                  %v1099 = vld [vmem:[%s1011 + $0x158] sm:$0xff]
                  %1100 = vst [vmem:[%s1012 + $0x2a8] sm:$0xff] %v1099
                  %v1101 = vld [vmem:[%s1011 + $0x160] sm:$0xff]
                  %1102 = vst [vmem:[%s1012 + $0x2c0] sm:$0xff] %v1101
                  %v1103 = vld [vmem:[%s1011 + $0x168] sm:$0xff]
                  %1104 = vst [vmem:[%s1012 + $0x2c8] sm:$0xff] %v1103
                  %v1105 = vld [vmem:[%s1011 + $0x170] sm:$0xff]
                  %1106 = vst [vmem:[%s1012 + $0x2e0] sm:$0xff] %v1105
                  %v1107 = vld [vmem:[%s1011 + $0x178] sm:$0xff]
                  %1108 = vst [vmem:[%s1012 + $0x2e8] sm:$0xff] %v1107
                  %v1109 = vld [vmem:[%s1011 + $0x180] sm:$0xff]
                  %1110 = vst [vmem:[%s1012 + $0x300] sm:$0xff] %v1109
                  %v1111 = vld [vmem:[%s1011 + $0x188] sm:$0xff]
                  %1112 = vst [vmem:[%s1012 + $0x308] sm:$0xff] %v1111
                  %v1113 = vld [vmem:[%s1011 + $0x190] sm:$0xff]
                  %1114 = vst [vmem:[%s1012 + $0x320] sm:$0xff] %v1113
                  %v1115 = vld [vmem:[%s1011 + $0x198] sm:$0xff]
                  %1116 = vst [vmem:[%s1012 + $0x328] sm:$0xff] %v1115
                  %v1117 = vld [vmem:[%s1011 + $0x1a0] sm:$0xff]
                  %1118 = vst [vmem:[%s1012 + $0x340] sm:$0xff] %v1117
                  %v1119 = vld [vmem:[%s1011 + $0x1a8] sm:$0xff]
                  %1120 = vst [vmem:[%s1012 + $0x348] sm:$0xff] %v1119
                  %v1121 = vld [vmem:[%s1011 + $0x1b0] sm:$0xff]
                  %1122 = vst [vmem:[%s1012 + $0x360] sm:$0xff] %v1121
                  %v1123 = vld [vmem:[%s1011 + $0x1b8] sm:$0xff]
                  %1124 = vst [vmem:[%s1012 + $0x368] sm:$0xff] %v1123
                  %v1125 = vld [vmem:[%s1011 + $0x1c0] sm:$0xff]
                  %1126 = vst [vmem:[%s1012 + $0x380] sm:$0xff] %v1125
                  %v1127 = vld [vmem:[%s1011 + $0x1c8] sm:$0xff]
                  %1128 = vst [vmem:[%s1012 + $0x388] sm:$0xff] %v1127
                  %v1129 = vld [vmem:[%s1011 + $0x1d0] sm:$0xff]
                  %1130 = vst [vmem:[%s1012 + $0x3a0] sm:$0xff] %v1129
                  %v1131 = vld [vmem:[%s1011 + $0x1d8] sm:$0xff]
                  %1132 = vst [vmem:[%s1012 + $0x3a8] sm:$0xff] %v1131
                  %v1133 = vld [vmem:[%s1011 + $0x1e0] sm:$0xff]
                  %1134 = vst [vmem:[%s1012 + $0x3c0] sm:$0xff] %v1133
                  %v1135 = vld [vmem:[%s1011 + $0x1e8] sm:$0xff]
                  %1136 = vst [vmem:[%s1012 + $0x3c8] sm:$0xff] %v1135
                  %v1137 = vld [vmem:[%s1011 + $0x1f0] sm:$0xff]
                  %1138 = vst [vmem:[%s1012 + $0x3e0] sm:$0xff] %v1137
                  %v1139 = vld [vmem:[%s1011 + $0x1f8] sm:$0xff]
                  %1140 = vst [vmem:[%s1012 + $0x3e8] sm:$0xff] %v1139
                $region64: #{tpu_custom_call.1} parent=58 // loop_footer
                  %s1010 = sadd.s32 1, %s1006
                $region65: #{tpu_custom_call.1} parent=58 // loop_footer_branch
                  %1005 = sbr.rel target = $region61
                $region66: #{tpu_custom_call.1} parent=58 // loop_exit
                  _
              $region59: #{tpu_custom_call.1} parent=43 // pred_fallthru
                _
              // Predicated region
              $region67: #{tpu_custom_call.1} parent=43 // pred_check
                _
              $region68: #{tpu_custom_call.1} parent=43 // pred_check_branch
                %1142 = sbr.rel target = $region70
              $region69: #{tpu_custom_call.1} parent=43 // pred_region
                _
              $region70: #{tpu_custom_call.1} parent=43 // pred_fallthru
                _
            $region44: #{tpu_custom_call.1} parent=39 // pred_fallthru
              _
            // Predicated region
            $region45: #{tpu_custom_call.1} parent=39 // pred_check
              _
            $region46: #{tpu_custom_call.1} parent=39 // pred_check_branch
              %865 = sbr.rel target = $region48
            $region47: #{tpu_custom_call.1} parent=39 // pred_region
              loop: start=0, step=1, limit=1
              $region49: #{tpu_custom_call.1} parent=47 // loop_pre_header
                _
              $region50: #{tpu_custom_call.1} parent=47 // loop_header
                %s868 = sphi 0, %s872
                %p869 = scmp.ge.s32.totalorder %s868, 1
                %s873 = sphi %s853, %s853
                %s874 = sphi %s859, %s859
              $region51: #{tpu_custom_call.1} parent=47 // loop_header_branch
                %871 = sbr.rel (%p869) target = $region55
              $region52: #{tpu_custom_call.1} parent=47 // loop_body
                %v875 = vld [vmem:[%s873] sm:$0xff]
                %876 = vst [vmem:[%s874] sm:$0xff] %v875
                %v877 = vld [vmem:[%s873 + $0x8] sm:$0xff]
                %878 = vst [vmem:[%s874 + $0x8] sm:$0xff] %v877
                %v879 = vld [vmem:[%s873 + $0x10] sm:$0xff]
                %880 = vst [vmem:[%s874 + $0x20] sm:$0xff] %v879
                %v881 = vld [vmem:[%s873 + $0x18] sm:$0xff]
                %882 = vst [vmem:[%s874 + $0x28] sm:$0xff] %v881
                %v883 = vld [vmem:[%s873 + $0x20] sm:$0xff]
                %884 = vst [vmem:[%s874 + $0x40] sm:$0xff] %v883
                %v885 = vld [vmem:[%s873 + $0x28] sm:$0xff]
                %886 = vst [vmem:[%s874 + $0x48] sm:$0xff] %v885
                %v887 = vld [vmem:[%s873 + $0x30] sm:$0xff]
                %888 = vst [vmem:[%s874 + $0x60] sm:$0xff] %v887
                %v889 = vld [vmem:[%s873 + $0x38] sm:$0xff]
                %890 = vst [vmem:[%s874 + $0x68] sm:$0xff] %v889
                %v891 = vld [vmem:[%s873 + $0x40] sm:$0xff]
                %892 = vst [vmem:[%s874 + $0x80] sm:$0xff] %v891
                %v893 = vld [vmem:[%s873 + $0x48] sm:$0xff]
                %894 = vst [vmem:[%s874 + $0x88] sm:$0xff] %v893
                %v895 = vld [vmem:[%s873 + $0x50] sm:$0xff]
                %896 = vst [vmem:[%s874 + $0xa0] sm:$0xff] %v895
                %v897 = vld [vmem:[%s873 + $0x58] sm:$0xff]
                %898 = vst [vmem:[%s874 + $0xa8] sm:$0xff] %v897
                %v899 = vld [vmem:[%s873 + $0x60] sm:$0xff]
                %900 = vst [vmem:[%s874 + $0xc0] sm:$0xff] %v899
                %v901 = vld [vmem:[%s873 + $0x68] sm:$0xff]
                %902 = vst [vmem:[%s874 + $0xc8] sm:$0xff] %v901
                %v903 = vld [vmem:[%s873 + $0x70] sm:$0xff]
                %904 = vst [vmem:[%s874 + $0xe0] sm:$0xff] %v903
                %v905 = vld [vmem:[%s873 + $0x78] sm:$0xff]
                %906 = vst [vmem:[%s874 + $0xe8] sm:$0xff] %v905
                %v907 = vld [vmem:[%s873 + $0x80] sm:$0xff]
                %908 = vst [vmem:[%s874 + $0x100] sm:$0xff] %v907
                %v909 = vld [vmem:[%s873 + $0x88] sm:$0xff]
                %910 = vst [vmem:[%s874 + $0x108] sm:$0xff] %v909
                %v911 = vld [vmem:[%s873 + $0x90] sm:$0xff]
                %912 = vst [vmem:[%s874 + $0x120] sm:$0xff] %v911
                %v913 = vld [vmem:[%s873 + $0x98] sm:$0xff]
                %914 = vst [vmem:[%s874 + $0x128] sm:$0xff] %v913
                %v915 = vld [vmem:[%s873 + $0xa0] sm:$0xff]
                %916 = vst [vmem:[%s874 + $0x140] sm:$0xff] %v915
                %v917 = vld [vmem:[%s873 + $0xa8] sm:$0xff]
                %918 = vst [vmem:[%s874 + $0x148] sm:$0xff] %v917
                %v919 = vld [vmem:[%s873 + $0xb0] sm:$0xff]
                %920 = vst [vmem:[%s874 + $0x160] sm:$0xff] %v919
                %v921 = vld [vmem:[%s873 + $0xb8] sm:$0xff]
                %922 = vst [vmem:[%s874 + $0x168] sm:$0xff] %v921
                %v923 = vld [vmem:[%s873 + $0xc0] sm:$0xff]
                %924 = vst [vmem:[%s874 + $0x180] sm:$0xff] %v923
                %v925 = vld [vmem:[%s873 + $0xc8] sm:$0xff]
                %926 = vst [vmem:[%s874 + $0x188] sm:$0xff] %v925
                %v927 = vld [vmem:[%s873 + $0xd0] sm:$0xff]
                %928 = vst [vmem:[%s874 + $0x1a0] sm:$0xff] %v927
                %v929 = vld [vmem:[%s873 + $0xd8] sm:$0xff]
                %930 = vst [vmem:[%s874 + $0x1a8] sm:$0xff] %v929
                %v931 = vld [vmem:[%s873 + $0xe0] sm:$0xff]
                %932 = vst [vmem:[%s874 + $0x1c0] sm:$0xff] %v931
                %v933 = vld [vmem:[%s873 + $0xe8] sm:$0xff]
                %934 = vst [vmem:[%s874 + $0x1c8] sm:$0xff] %v933
                %v935 = vld [vmem:[%s873 + $0xf0] sm:$0xff]
                %936 = vst [vmem:[%s874 + $0x1e0] sm:$0xff] %v935
                %v937 = vld [vmem:[%s873 + $0xf8] sm:$0xff]
                %938 = vst [vmem:[%s874 + $0x1e8] sm:$0xff] %v937
                %v939 = vld [vmem:[%s873 + $0x100] sm:$0xff]
                %940 = vst [vmem:[%s874 + $0x200] sm:$0xff] %v939
                %v941 = vld [vmem:[%s873 + $0x108] sm:$0xff]
                %942 = vst [vmem:[%s874 + $0x208] sm:$0xff] %v941
                %v943 = vld [vmem:[%s873 + $0x110] sm:$0xff]
                %944 = vst [vmem:[%s874 + $0x220] sm:$0xff] %v943
                %v945 = vld [vmem:[%s873 + $0x118] sm:$0xff]
                %946 = vst [vmem:[%s874 + $0x228] sm:$0xff] %v945
                %v947 = vld [vmem:[%s873 + $0x120] sm:$0xff]
                %948 = vst [vmem:[%s874 + $0x240] sm:$0xff] %v947
                %v949 = vld [vmem:[%s873 + $0x128] sm:$0xff]
                %950 = vst [vmem:[%s874 + $0x248] sm:$0xff] %v949
                %v951 = vld [vmem:[%s873 + $0x130] sm:$0xff]
                %952 = vst [vmem:[%s874 + $0x260] sm:$0xff] %v951
                %v953 = vld [vmem:[%s873 + $0x138] sm:$0xff]
                %954 = vst [vmem:[%s874 + $0x268] sm:$0xff] %v953
                %v955 = vld [vmem:[%s873 + $0x140] sm:$0xff]
                %956 = vst [vmem:[%s874 + $0x280] sm:$0xff] %v955
                %v957 = vld [vmem:[%s873 + $0x148] sm:$0xff]
                %958 = vst [vmem:[%s874 + $0x288] sm:$0xff] %v957
                %v959 = vld [vmem:[%s873 + $0x150] sm:$0xff]
                %960 = vst [vmem:[%s874 + $0x2a0] sm:$0xff] %v959
                %v961 = vld [vmem:[%s873 + $0x158] sm:$0xff]
                %962 = vst [vmem:[%s874 + $0x2a8] sm:$0xff] %v961
                %v963 = vld [vmem:[%s873 + $0x160] sm:$0xff]
                %964 = vst [vmem:[%s874 + $0x2c0] sm:$0xff] %v963
                %v965 = vld [vmem:[%s873 + $0x168] sm:$0xff]
                %966 = vst [vmem:[%s874 + $0x2c8] sm:$0xff] %v965
                %v967 = vld [vmem:[%s873 + $0x170] sm:$0xff]
                %968 = vst [vmem:[%s874 + $0x2e0] sm:$0xff] %v967
                %v969 = vld [vmem:[%s873 + $0x178] sm:$0xff]
                %970 = vst [vmem:[%s874 + $0x2e8] sm:$0xff] %v969
                %v971 = vld [vmem:[%s873 + $0x180] sm:$0xff]
                %972 = vst [vmem:[%s874 + $0x300] sm:$0xff] %v971
                %v973 = vld [vmem:[%s873 + $0x188] sm:$0xff]
                %974 = vst [vmem:[%s874 + $0x308] sm:$0xff] %v973
                %v975 = vld [vmem:[%s873 + $0x190] sm:$0xff]
                %976 = vst [vmem:[%s874 + $0x320] sm:$0xff] %v975
                %v977 = vld [vmem:[%s873 + $0x198] sm:$0xff]
                %978 = vst [vmem:[%s874 + $0x328] sm:$0xff] %v977
                %v979 = vld [vmem:[%s873 + $0x1a0] sm:$0xff]
                %980 = vst [vmem:[%s874 + $0x340] sm:$0xff] %v979
                %v981 = vld [vmem:[%s873 + $0x1a8] sm:$0xff]
                %982 = vst [vmem:[%s874 + $0x348] sm:$0xff] %v981
                %v983 = vld [vmem:[%s873 + $0x1b0] sm:$0xff]
                %984 = vst [vmem:[%s874 + $0x360] sm:$0xff] %v983
                %v985 = vld [vmem:[%s873 + $0x1b8] sm:$0xff]
                %986 = vst [vmem:[%s874 + $0x368] sm:$0xff] %v985
                %v987 = vld [vmem:[%s873 + $0x1c0] sm:$0xff]
                %988 = vst [vmem:[%s874 + $0x380] sm:$0xff] %v987
                %v989 = vld [vmem:[%s873 + $0x1c8] sm:$0xff]
                %990 = vst [vmem:[%s874 + $0x388] sm:$0xff] %v989
                %v991 = vld [vmem:[%s873 + $0x1d0] sm:$0xff]
                %992 = vst [vmem:[%s874 + $0x3a0] sm:$0xff] %v991
                %v993 = vld [vmem:[%s873 + $0x1d8] sm:$0xff]
                %994 = vst [vmem:[%s874 + $0x3a8] sm:$0xff] %v993
                %v995 = vld [vmem:[%s873 + $0x1e0] sm:$0xff]
                %996 = vst [vmem:[%s874 + $0x3c0] sm:$0xff] %v995
                %v997 = vld [vmem:[%s873 + $0x1e8] sm:$0xff]
                %998 = vst [vmem:[%s874 + $0x3c8] sm:$0xff] %v997
                %v999 = vld [vmem:[%s873 + $0x1f0] sm:$0xff]
                %1000 = vst [vmem:[%s874 + $0x3e0] sm:$0xff] %v999
                %v1001 = vld [vmem:[%s873 + $0x1f8] sm:$0xff]
                %1002 = vst [vmem:[%s874 + $0x3e8] sm:$0xff] %v1001
              $region53: #{tpu_custom_call.1} parent=47 // loop_footer
                %s872 = sadd.s32 1, %s868
              $region54: #{tpu_custom_call.1} parent=47 // loop_footer_branch
                %867 = sbr.rel target = $region50
              $region55: #{tpu_custom_call.1} parent=47 // loop_exit
                _
            $region48: #{tpu_custom_call.1} parent=39 // pred_fallthru
              _
          $region40: #{tpu_custom_call.1} parent=35 // pred_fallthru
            _
          %1143 = vnop
        $region36: #{tpu_custom_call.1} parent=31 // pred_fallthru
          _
      $region32: #{tpu_custom_call.1} parent=5 // pred_fallthru
        _
      %p1144 = scmp.le.s32.totalorder 2, %s9
      // Predicated region
      $region71: #{tpu_custom_call.1} parent=5 // pred_check
        %p1145 = pneg %p1144
      $region72: #{tpu_custom_call.1} parent=5 // pred_check_branch
        %1147 = sbr.rel (%p1145) target = $region74
      $region73: #{tpu_custom_call.1} parent=5 // pred_region
        %s1148 = ssub.s32 %s9, 2
        // Predicated region
        $region75: #{tpu_custom_call.1} parent=73 // pred_check
          %p1149 = pneg %p106
        $region76: #{tpu_custom_call.1} parent=73 // pred_check_branch
          %1151 = sbr.rel (%p1149) target = $region78
        $region77: #{tpu_custom_call.1} parent=73 // pred_region
          %s1152 = sand.u32 %s91, 1
          %s1153 = sand.u32 %s91, 1
          %s1154 = smul.addr %s1153, 512
          %s1155 = scalar_lea.vmem [#allocation2], %s1154
        $region78: #{tpu_custom_call.1} parent=73 // pred_fallthru
          _
      $region74: #{tpu_custom_call.1} parent=5 // pred_fallthru
        _
    $region6: #{tpu_custom_call.1} parent=1 // loop_footer
      %s13 = sadd.s32 1, %s9
    $region7: #{tpu_custom_call.1} parent=1 // loop_footer_branch
      %8 = sbr.rel target = $region3
    $region8: #{tpu_custom_call.1} parent=1 // loop_exit
      _

</llo_original>
